<compile_context>
chip_gen: v7x
topology: tpu7x:2x2x1
jax: 0.10.0
libtpu: 0.0.40
codegen_flags: <defaults>
</compile_context>

<pallas_src>
import jax
import jax.numpy as jnp
from jax.experimental import pallas as pl
from jax.experimental.pallas import tpu as pltpu


_LANE = 128                            # TPU lane width
_K_MAX = 2048                          # max lane-dense slab width (multiple of 128)
_TARGET_TILE_BYTES = 8 * 1024 * 1024   # ~8 MiB blocks: per-step overhead <~7% even at v7x BW
_MIN_SPLIT_BYTES = 2 * 1024 * 1024     # above this, force >=2 grid steps (pipelining / 2 TCs)


def _vmem_limit_bytes() -> int:
    """Generation-aware scoped-VMEM limit (resident = 8 MiB tile x 2 ops x 2 bufs = 32 MiB)."""
    cap = 64 * 1024 * 1024
    try:
        cap = int(pltpu.get_tpu_info().vmem_capacity_bytes)
    except Exception:
        pass
    if cap >= 100 * 1024 * 1024:       # v5e / v6e: 128 MiB physical VMEM
        return 64 * 1024 * 1024
    return 48 * 1024 * 1024            # v7x: 64 MiB physical VMEM


def _make_kernel(compute_fn):
    def _kernel(x_ref, o_ref):
        tile = x_ref[...]
        o_ref[...] = tile if compute_fn is None else compute_fn(tile)
    return _kernel


def _pick_lane_width(total: int) -> int:
    """Largest multiple of 128 (<= _K_MAX) dividing `total` (requires total % 128 == 0)."""
    for cand in range(_K_MAX, _LANE - 1, -_LANE):
        if total % cand == 0:
            return cand
    return _LANE


def _pick_tile_rows(rows: int, lane_width: int, itemsize: int) -> int:
    """Row-tile size: dtype-aware sublane alignment, ~8 MiB budget, cdiv-friendly."""
    sublane = 8 * max(1, 4 // max(1, itemsize))      # f32: 8, bf16: 16, int8/fp8: 32
    budget = max(sublane, _TARGET_TILE_BYTES // (lane_width * itemsize))
    budget = max(sublane, (budget // sublane) * sublane)
    if rows <= budget:
        # Mid-size tensors: split into >= 2 blocks so input/output DMA overlap
        # and v7x 2-TC sharding stay active; tiny tensors use one full block.
        if rows * lane_width * itemsize >= _MIN_SPLIT_BYTES and rows >= 2 * sublane:
            half = ((rows + 1) // 2 + sublane - 1) // sublane * sublane
            return min(half, budget)
        return rows                     # full-dim block: always layout-legal
    return budget


def module_forward(x: jax.Array, compute_fn=None, *, force_pallas: bool = False) -> jax.Array:
    """Pallas-backed forward for the (abstract) Module base class.

    `compute_fn` is the hook a concrete subclass plugs its (shape/dtype
    preserving, tile-local) math into.  With no compute (the abstract base's
    only defined semantics = identity) the HBM round-trip is skipped entirely.
    """
    if compute_fn is None and not force_pallas:
        return x                        # pure identity: don't pay 2x HBM traffic
    if x.size == 0:
        return x

    orig_shape = x.shape
    total = x.size
    itemsize = jnp.dtype(x.dtype).itemsize

    flat = x.reshape(-1)
    pad = (-total) % _LANE
    if pad:
        flat = jnp.pad(flat, (0, pad))  # lane-sparse counts: pad instead of one huge block
        k = _LANE
    else:
        k = _pick_lane_width(total)
    padded_total = total + pad
    rows = padded_total // k
    x2d = flat.reshape(rows, k)

    tile_rows = _pick_tile_rows(rows, k, itemsize)
    grid = (pl.cdiv(rows, tile_rows),)

    out2d = pl.pallas_call(
        _make_kernel(compute_fn),
        out_shape=jax.ShapeDtypeStruct((rows, k), x.dtype),
        grid_spec=pltpu.PrefetchScalarGridSpec(
            num_scalar_prefetch=0,
            grid=grid,
            in_specs=[pl.BlockSpec((tile_rows, k), lambda i: (i, 0))],
            out_specs=pl.BlockSpec((tile_rows, k), lambda i: (i, 0)),
        ),
        compiler_params=pltpu.CompilerParams(
            dimension_semantics=("parallel",),
            vmem_limit_bytes=_vmem_limit_bytes(),
        ),
        cost_estimate=pl.CostEstimate(
            flops=0, transcendentals=0,
            bytes_accessed=2 * padded_total * itemsize),
        # Let the output alias the input buffer when the caller donates it.
        input_output_aliases={0: 0},
    )(x2d)

    out_flat = out2d.reshape(-1)
    if pad:
        out_flat = out_flat[:total]
    return out_flat.reshape(orig_shape)


if __name__ == "__main__":
    key = jax.random.PRNGKey(0)
    x = jax.random.normal(key, (2, 4, 16, 16), dtype=jnp.float32)

    # Pure-identity fast path (abstract forward adds no compute -> no HBM copy).
    y_fast = module_forward(x)
    jax.block_until_ready(y_fast)
    assert y_fast.shape == x.shape and y_fast.dtype == x.dtype
    assert bool(jnp.allclose(y_fast, x)), "identity fast path mismatch"

    # Exercise the Pallas template (single lane-dense block at this small shape).
    y_kernel = module_forward(x, force_pallas=True)
    jax.block_until_ready(y_kernel)
    assert y_kernel.shape == x.shape and y_kernel.dtype == x.dtype
    assert bool(jnp.allclose(y_kernel, x)), "pallas template mismatch"

    # Multi-block cdiv path: grid >= 2 with a partial last block.
    x_big = jax.random.normal(key, (5, 13, 64, 128), dtype=jnp.float32)
    y_big = module_forward(x_big, force_pallas=True)
    jax.block_until_ready(y_big)
    assert bool(jnp.array_equal(y_big, x_big)), "multi-block path mismatch"

    # Sub-32-bit dtype path (bf16 sublane alignment).
    x_bf16 = jax.random.normal(key, (2, 4, 16, 16)).astype(jnp.bfloat16)
    y_bf16 = module_forward(x_bf16, force_pallas=True)
    jax.block_until_ready(y_bf16)
    assert bool(jnp.array_equal(y_bf16, x_bf16)), "bf16 path mismatch"

    print("KERNEL_OK")
</pallas_src>

<mosaic_0001>
module attributes {stable_mosaic.version = 11 : i64} {
  func.func @_kernel(%arg0: i32, %arg1: memref<1x2048xf32, #tpu.memory_space<vmem>>, %arg2: memref<1x2048xf32, #tpu.memory_space<vmem>>) attributes {dimension_semantics = [#tpu.dimension_semantics<parallel>], iteration_bounds = array<i64: 1>, scalar_prefetch = 0 : i64, scratch_operands = 0 : i64, tpu.core_type = #tpu.core_type<tc>, window_params = [{transform_indices = @transform_0, window_bounds = array<i64: 1, 2048>}, {transform_indices = @transform_1, window_bounds = array<i64: 1, 2048>}]} {
    %c0 = arith.constant 0 : index
    %c0_0 = arith.constant 0 : index
    %0 = vector.load %arg1[%c0, %c0_0] : memref<1x2048xf32, #tpu.memory_space<vmem>>, vector<1x2048xf32>
    %c0_1 = arith.constant 0 : index
    %c0_2 = arith.constant 0 : index
    %1 = vector.load %arg2[%c0_1, %c0_2] : memref<1x2048xf32, #tpu.memory_space<vmem>>, vector<1x2048xf32>
    tpu.vector_store %arg2[%c0_1, %c0_2], %0 {strides = array<i32>} : memref<1x2048xf32, #tpu.memory_space<vmem>>, vector<1x2048xf32>,
    return
  }
  func.func @transform_0(%arg0: i32) -> (i32, i32) {
    %c0_i32 = arith.constant 0 : i32
    %c0_i32_0 = arith.constant 0 : i32
    return %arg0, %c0_i32 : i32, i32
  }
  func.func @transform_1(%arg0: i32) -> (i32, i32) {
    %c0_i32 = arith.constant 0 : i32
    %c0_i32_0 = arith.constant 0 : i32
    return %arg0, %c0_i32 : i32, i32
  }
}

</mosaic_0001>

<llo_original>
// kernel: tpu_custom_call.1
$region0: #{tpu_custom_call.1}
  #allocation0 [shape = 'u32[]', space=smem, size = 0x4, offset = 0x4, fixed_abs, tag = 'smem constant byte address 0x4 - core index']
  #allocation1 [shape = 'u32[144,128]{1,0:T(1,128)}', space=vmem, size = 0x12000, scoped, tag = 'internal scratch']
  %s0 = inlined_call_operand.hbm [shape: f32[1,2048], index: 0, kind: input, shape index: {}, may-alias: {0,1}]
  %s1 = inlined_call_operand.hbm [shape: f32[1,2048], index: 1, kind: output, shape index: {}, may-alias: {0,1}]
  %s2 = sld [smem:[#allocation0]]
  $region18: #{tpu_custom_call.1} parent=0
    _
  %s4 = ssub.s32 1, %s2
  %s5 = scalar_select 0, %s4, %s2
  $region1: #{tpu_custom_call.1} parent=0
    #allocation2 [shape = 'u8[8192]{0}', space=vmem, size = 0x2000, scoped, tag = 'input window, operand 0, single buffered']
    #allocation3 [shape = 's32[1]{0}', space=sflag, size = 0x4, scoped, tag = 'scoped memory for tpu_custom_call.1']
    #allocation4 [shape = 's32[1]{0}', space=sflag, size = 0x4, scoped, tag = 'scoped memory for tpu_custom_call.1']
    #allocation5 [shape = 'u8[8192]{0}', space=vmem, size = 0x2000, scoped, tag = 'output window, operand 0, single buffered']
    %6 = vsyncpa [#allocation3], 0
    %7 = vsyncpa [#allocation4], 0
    // Predicated region
    $region2: #{tpu_custom_call.1} parent=1 // pred_check
      _
    $region3: #{tpu_custom_call.1} parent=1 // pred_check_branch
      %9 = sbr.rel (0) target = $region5
    $region4: #{tpu_custom_call.1} parent=1 // pred_region
      %s11 = ssub.s32 256, 256
      %12 = vsyncadd [#allocation3], %s11
      %s14 = sshll.u32 [#allocation2], 4
      %s15 = int_to_ptr.vmem [resolvable:$true] %s14
      %17 = dma.hbm_to_vmem [thread:$0]  %s0, 256, %s15, [#allocation3]
    $region5: #{tpu_custom_call.1} parent=1 // pred_fallthru
      _
    // Predicated region
    $region6: #{tpu_custom_call.1} parent=1 // pred_check
      _
    $region7: #{tpu_custom_call.1} parent=1 // pred_check_branch
      %19 = sbr.rel (0) target = $region9
    $region8: #{tpu_custom_call.1} parent=1 // pred_region
      %20 = dma.done [#allocation3], 256
    $region9: #{tpu_custom_call.1} parent=1 // pred_fallthru
      _
    %v21 = vld [vmem:[#allocation2] sm:$0xff]
    %v22 = vld [vmem:[#allocation2 + $0x8] sm:$0xff]
    %23 = vst [vmem:[#allocation5] sm:$0xff] %v21
    %24 = vst [vmem:[#allocation5 + $0x8] sm:$0xff] %v22
    // Predicated region
    $region10: #{tpu_custom_call.1} parent=1 // pred_check
      _
    $region11: #{tpu_custom_call.1} parent=1 // pred_check_branch
      %26 = sbr.rel (0) target = $region13
    $region12: #{tpu_custom_call.1} parent=1 // pred_region
      %s28 = ssub.s32 256, 256
      %29 = vsyncadd [#allocation4], %s28
      %s31 = sshll.u32 [#allocation5], 4
      %s32 = int_to_ptr.vmem [resolvable:$true] %s31
      %34 = dma.vmem_to_hbm [thread:$0]  %s32, 256, %s1, [#allocation4]
    $region13: #{tpu_custom_call.1} parent=1 // pred_fallthru
      _
    // Predicated region
    $region14: #{tpu_custom_call.1} parent=1 // pred_check
      _
    $region15: #{tpu_custom_call.1} parent=1 // pred_check_branch
      %36 = sbr.rel (0) target = $region17
    $region16: #{tpu_custom_call.1} parent=1 // pred_region
      %37 = dma.done [#allocation4], 256
    $region17: #{tpu_custom_call.1} parent=1 // pred_fallthru
      _
    %38 = vsyncpa [#allocation3], 1
    %39 = vsyncpa [#allocation4], 1

</llo_original>
